<compile_context>
chip_gen: v6e
topology: v6e:2x2x1
jax: 0.10.0
libtpu: 0.0.40
codegen_flags: <defaults>
</compile_context>

<pallas_src>
import functools

import jax
import jax.numpy as jnp
from jax.experimental import pallas as pl
from jax.experimental.pallas import tpu as pltpu

EMBED_DIM = 3
NODE_START = 0
TIME_START = 1
TIME_END = 6


def _round_up(v, m):
    return -(-v // m) * m


def _fixer_kernel(slab_ref, out_ref):
    """slab_ref: [4, tm]  rows = (feat_last, gap_last*s^2, c_lin, d_lin), tm lanes per step.
    out_ref:  [1, tm]  fixed last feature column."""
    slab = slab_ref[...]
    feat_last = slab[0:1, :]
    gap_s2 = slab[1:2, :]
    c_lin = slab[2:3, :]
    d_lin = slab[3:4, :]
    c = jax.nn.sigmoid(c_lin) * jnp.exp(-gap_s2)
    out_ref[...] = feat_last * c + d_lin * (1.0 - c)


def init_params(key, num_nodes, fea_dim):
    f = (fea_dim - 6) // 2
    din = EMBED_DIM * 6 + f
    keys = jax.random.split(key, 9)
    lim = 1.0 / jnp.sqrt(jnp.float32(din))
    return {
        "node_em":    jax.random.normal(keys[0], (num_nodes, EMBED_DIM), jnp.float32),
        "month_em":   jax.random.normal(keys[1], (12, EMBED_DIM), jnp.float32),
        "day_em":     jax.random.normal(keys[2], (31, EMBED_DIM), jnp.float32),
        "weekday_em": jax.random.normal(keys[3], (7, EMBED_DIM), jnp.float32),
        "hour_em":    jax.random.normal(keys[4], (24, EMBED_DIM), jnp.float32),
        "minute_em":  jax.random.normal(keys[5], (60, EMBED_DIM), jnp.float32),
        # Linear weights stored transposed ([in, out]) so z @ W matches nn.Linear.
        "wd": jax.random.uniform(keys[6], (din, f), jnp.float32, -lim, lim),
        "bd": jax.random.uniform(keys[7], (1, f), jnp.float32, -lim, lim),
        "wc": jax.random.uniform(keys[8], (din, f), jnp.float32, -lim, lim),
        "bc": jnp.full((1, f), 3.0, jnp.float32),   # nn.init.constant_(self.c.bias, 3)
        "s":  jnp.full((1, f), 0.1, jnp.float32),   # nn.init.constant_(self.s, 0.1)
        # NOTE: self.proj (Linear(F, 1)) is never used in forward(), so it is omitted.
    }


def _prepare_rows(params, x, fea_dim):
    """Single fused pass over x: produce the four per-element rows the kernel needs.

    Exact (up to fp reassociation) reduction of the module: only the LAST output column is used,
    so each embedding table collapses to a per-entry scalar and the F-channel dot products are
    folded here (the wrapper already reads feat to build the slab)."""
    B, T, N, _ = x.shape
    f = (fea_dim - 6) // 2
    E = EMBED_DIM
    M = B * T * N

    xr = x.reshape(M, fea_dim)
    node = xr[:, NODE_START].astype(jnp.int32)
    time = xr[:, TIME_START:TIME_END].astype(jnp.int32)
    feat = xr[:, TIME_END:TIME_END + f].astype(jnp.float32)
    gap_last = xr[:, TIME_END + 2 * f - 1].astype(jnp.float32)

    wc_last = params["wc"][:, -1]            # [din], last output column only
    wd_last = params["wd"][:, -1]

    # TODO(synk): month/day indices of 0 silently wrap to -1 here; PyTorch nn.Embedding would raise.
    tables = [params["node_em"], params["month_em"], params["day_em"],
              params["weekday_em"], params["hour_em"], params["minute_em"]]
    idx = [node, time[:, 0] - 1, time[:, 1] - 1, time[:, 2], time[:, 3], time[:, 4]]

    ec = jnp.full((M,), params["bc"][0, -1], jnp.float32)
    ed = jnp.full((M,), params["bd"][0, -1], jnp.float32)
    for k, (tab, ix) in enumerate(zip(tables, idx)):
        seg = slice(k * E, (k + 1) * E)
        ec = ec + (tab @ wc_last[seg])[ix]   # tiny [table_size] matvec, then scalar gather
        ed = ed + (tab @ wd_last[seg])[ix]

    # Feature part of the last column, computed here (removes the in-kernel XLU reduce and the
    # feat.T transpose pass entirely).
    c_lin = feat @ wc_last[6 * E:] + ec      # [M]
    d_lin = feat @ wd_last[6 * E:] + ed      # [M]

    s2 = params["s"][0, -1] ** 2
    rows = (feat[:, -1], gap_last * s2, c_lin, d_lin)
    return rows, (B, T, N)


def input_fixer_forward(params, x, *, fea_dim, tm=65536):
    """Forward pass. `tm` = lanes per grid step (multiple of 128); default sized so the ~0.35 us
    per-step overhead is amortized on v5e/v6e/v7x while staying ~8 MiB of VMEM."""
    assert tm % 128 == 0 and tm > 0
    rows, (B, T, N) = _prepare_rows(params, x, fea_dim)
    M = B * T * N

    # Lane-tile sizing: biggest tile <= tm, then force an even number of grid steps (when M is
    # large enough) so both of v7x's TensorCores get balanced work along the "parallel" axis.
    lanes = _round_up(M, 128)
    tm_eff = min(tm, lanes)
    steps = pl.cdiv(M, tm_eff)
    if steps == 1 and lanes > 128:
        steps = 2
    elif steps > 1 and steps % 2 == 1:
        steps += 1
    tm_eff = _round_up(pl.cdiv(M, steps), 128)
    M_pad = steps * tm_eff
    pad = M_pad - M

    # Fused slab build: per-row zero pad feeds the concat -> one materialization of [4, M_pad].
    slab = jnp.concatenate(
        [jnp.pad(r, (0, pad))[None, :] for r in rows], axis=0)          # [4, M_pad]

    # Scoped-VMEM guard (only matters if a caller sweeps tm far past the default).
    vmem_need = 2 * 2 * (8 * tm_eff * 4) + (4 << 20)   # double-buffered slab + out (8 phys sublanes)
    cp = {"dimension_semantics": ("parallel",)}
    if vmem_need > (32 << 20):
        cp["vmem_limit_bytes"] = min(vmem_need, 64 << 20)

    out = pl.pallas_call(
        _fixer_kernel,
        out_shape=jax.ShapeDtypeStruct((1, M_pad), jnp.float32),
        grid_spec=pltpu.PrefetchScalarGridSpec(
            num_scalar_prefetch=0,
            grid=(steps,),
            in_specs=[pl.BlockSpec((4, tm_eff), lambda i: (0, i))],     # single fused slab
            out_specs=pl.BlockSpec((1, tm_eff), lambda i: (0, i)),      # lane-dense output tile
        ),
        compiler_params=pltpu.CompilerParams(**cp),
    )(slab)

    return out[0, :M].reshape(B, T, N, 1)


def reference_forward(params, x, fea_dim):
    """Pure-JAX replica of the PyTorch forward (full column computation, then last-column slice)."""
    f = (fea_dim - 6) // 2
    node = x[..., NODE_START].astype(jnp.int32)
    time = x[..., TIME_START:TIME_END].astype(jnp.int32)
    feat_gap = x[..., TIME_END:].astype(jnp.float32)
    feat = feat_gap[..., :f]
    gap = feat_gap[..., f:2 * f]
    z = jnp.concatenate([
        params["node_em"][node],
        params["month_em"][time[..., 0] - 1],
        params["day_em"][time[..., 1] - 1],
        params["weekday_em"][time[..., 2]],
        params["hour_em"][time[..., 3]],
        params["minute_em"][time[..., 4]],
        feat], axis=-1)
    c = jax.nn.sigmoid(z @ params["wc"] + params["bc"][0])
    g = jnp.exp(-gap * (params["s"][0] ** 2))
    c = c * g
    d = z @ params["wd"] + params["bd"][0]
    feat_new = feat * c + d * (1.0 - c)
    return feat_new[..., -1:]


if __name__ == "__main__":
    num_nodes = 10
    fea_dim = 22            # -> F = (22 - 6) // 2 = 8, x last dim = 22
    B, T, N = 2, 8, 4
    F = (fea_dim - 6) // 2

    key = jax.random.PRNGKey(0)
    kp, kx = jax.random.split(key)
    params = init_params(kp, num_nodes, fea_dim)

    ks = jax.random.split(kx, 8)
    node    = jax.random.randint(ks[0], (B, T, N, 1), 0, num_nodes)
    month   = jax.random.randint(ks[1], (B, T, N, 1), 1, 13)
    day     = jax.random.randint(ks[2], (B, T, N, 1), 1, 32)
    weekday = jax.random.randint(ks[3], (B, T, N, 1), 0, 7)
    hour    = jax.random.randint(ks[4], (B, T, N, 1), 0, 24)
    minute  = jax.random.randint(ks[5], (B, T, N, 1), 0, 60)
    feat    = jax.random.normal(ks[6], (B, T, N, F), jnp.float32)
    gap     = jax.random.uniform(ks[7], (B, T, N, F), jnp.float32, 0.0, 5.0)

    x = jnp.concatenate(
        [node.astype(jnp.float32), month.astype(jnp.float32), day.astype(jnp.float32),
         weekday.astype(jnp.float32), hour.astype(jnp.float32), minute.astype(jnp.float32),
         feat, gap], axis=-1)

    fwd = jax.jit(functools.partial(input_fixer_forward, fea_dim=fea_dim, tm=65536))
    out = jax.block_until_ready(fwd(params, x))
    ref = jax.block_until_ready(reference_forward(params, x, fea_dim))

    assert out.shape == (B, T, N, 1), out.shape
    assert jnp.allclose(out, ref, atol=1e-4, rtol=1e-4), float(jnp.max(jnp.abs(out - ref)))
    print("KERNEL_OK")
</pallas_src>

<mosaic_0001>
module attributes {stable_mosaic.version = 11 : i64} {
  func.func @_fixer_kernel(%arg0: i32, %arg1: memref<4x128xf32, #tpu.memory_space<vmem>>, %arg2: memref<1x128xf32, #tpu.memory_space<vmem>>) attributes {dimension_semantics = [#tpu.dimension_semantics<parallel>], iteration_bounds = array<i64: 1>, scalar_prefetch = 0 : i64, scratch_operands = 0 : i64, tpu.core_type = #tpu.core_type<tc>, window_params = [{transform_indices = @transform_0, window_bounds = array<i64: 4, 128>}, {transform_indices = @transform_1, window_bounds = array<i64: 1, 128>}]} {
    %c0 = arith.constant 0 : index
    %c0_0 = arith.constant 0 : index
    %0 = vector.load %arg1[%c0, %c0_0] : memref<4x128xf32, #tpu.memory_space<vmem>>, vector<4x128xf32>
    %1 = vector.extract_strided_slice %0 {offsets = [0, 0], sizes = [1, 128], strides = [1, 1]} : vector<4x128xf32> to vector<1x128xf32>
    %2 = vector.extract_strided_slice %0 {offsets = [1, 0], sizes = [1, 128], strides = [1, 1]} : vector<4x128xf32> to vector<1x128xf32>
    %3 = vector.extract_strided_slice %0 {offsets = [2, 0], sizes = [1, 128], strides = [1, 1]} : vector<4x128xf32> to vector<1x128xf32>
    %4 = vector.extract_strided_slice %0 {offsets = [3, 0], sizes = [1, 128], strides = [1, 1]} : vector<4x128xf32> to vector<1x128xf32>
    %5 = arith.negf %3 : vector<1x128xf32>
    %6 = math.exp %5 : vector<1x128xf32>
    %cst = arith.constant 1.000000e+00 : f32
    %7 = vector.broadcast %cst : f32 to vector<1x128xf32>
    %8 = arith.addf %7, %6 : vector<1x128xf32>
    %9 = arith.divf %7, %8 : vector<1x128xf32>
    %cst_1 = arith.constant 0.000000e+00 : f32
    %10 = vector.broadcast %cst_1 : f32 to vector<1x128xf32>
    %11 = arith.subf %10, %2 : vector<1x128xf32>
    %12 = math.exp %11 : vector<1x128xf32>
    %13 = arith.mulf %9, %12 : vector<1x128xf32>
    %14 = arith.mulf %1, %13 : vector<1x128xf32>
    %cst_2 = arith.constant 1.000000e+00 : f32
    %15 = vector.broadcast %cst_2 : f32 to vector<1x128xf32>
    %16 = arith.subf %15, %13 : vector<1x128xf32>
    %17 = arith.mulf %4, %16 : vector<1x128xf32>
    %18 = arith.addf %14, %17 : vector<1x128xf32>
    %c0_3 = arith.constant 0 : index
    %c0_4 = arith.constant 0 : index
    %19 = vector.load %arg2[%c0_3, %c0_4] : memref<1x128xf32, #tpu.memory_space<vmem>>, vector<1x128xf32>
    tpu.vector_store %arg2[%c0_3, %c0_4], %18 {strides = array<i32>} : memref<1x128xf32, #tpu.memory_space<vmem>>, vector<1x128xf32>,
    return
  }
  func.func @transform_0(%arg0: i32) -> (i32, i32) {
    %c0_i32 = arith.constant 0 : i32
    %c0_i32_0 = arith.constant 0 : i32
    return %c0_i32, %arg0 : i32, i32
  }
  func.func @transform_1(%arg0: i32) -> (i32, i32) {
    %c0_i32 = arith.constant 0 : i32
    %c0_i32_0 = arith.constant 0 : i32
    return %c0_i32, %arg0 : i32, i32
  }
}

</mosaic_0001>

<llo_original>
// kernel: squeeze.27
$region0: #{squeeze.27}
  %s0 = inlined_call_operand.vmem [shape: f32[64], index: 0, kind: input, shape index: {}]
  %s1 = inlined_call_operand.vmem [shape: f32[2,8,4,1], index: 1, kind: output, shape index: {}]
  $region1: #{squeeze.27} parent=0
    #allocation0 [shape = 'u8[4096]{0}', space=vmem, size = 0x1000, scoped, tag = 'scoped mem for input reshape']
    %s3 = sshll.u32 1, 1
    %s4 = ssub.s32 %s3, 1
    %v5 = vld [vmem:[%s0] sm:%s4]
    %6 = vst [vmem:[#allocation0] sm:%s4] %v5
    %v7 = vld [vmem:[#allocation0] sm:$0x1]
    %vm8 = vcmask 31744
    %9 = vst.msk [vmem:[%s1] sm:$0x1] %vm8, %v7
    %v10 = vld [vmem:[#allocation0] sm:$0x1]
    %11 = vrot.lane.b32.xlu0 %v10, 124
    %v12 = vpop.permute.xlu0 %11
    %vm13 = vcmask 31744
    %s14 = scalar_lea.vmem %s1, 1
    %15 = vst.msk [vmem:[%s14] sm:$0x1] %vm13, %v12
    %v16 = vld [vmem:[#allocation0] sm:$0x1]
    %17 = vrot.lane.b32.xlu0 %v16, 120
    %v18 = vpop.permute.xlu0 %17
    %vm19 = vcmask 31744
    %s20 = scalar_lea.vmem %s1, 2
    %21 = vst.msk [vmem:[%s20] sm:$0x1] %vm19, %v18
    %v22 = vld [vmem:[#allocation0] sm:$0x1]
    %23 = vrot.lane.b32.xlu0 %v22, 116
    %v24 = vpop.permute.xlu0 %23
    %vm25 = vcmask 31744
    %s26 = scalar_lea.vmem %s1, 3
    %27 = vst.msk [vmem:[%s26] sm:$0x1] %vm25, %v24
    %v28 = vld [vmem:[#allocation0] sm:$0x1]
    %29 = vrot.lane.b32.xlu0 %v28, 112
    %v30 = vpop.permute.xlu0 %29
    %vm31 = vcmask 31744
    %s32 = scalar_lea.vmem %s1, 4
    %33 = vst.msk [vmem:[%s32] sm:$0x1] %vm31, %v30
    %v34 = vld [vmem:[#allocation0] sm:$0x1]
    %35 = vrot.lane.b32.xlu0 %v34, 108
    %v36 = vpop.permute.xlu0 %35
    %vm37 = vcmask 31744
    %s38 = scalar_lea.vmem %s1, 5
    %39 = vst.msk [vmem:[%s38] sm:$0x1] %vm37, %v36
    %v40 = vld [vmem:[#allocation0] sm:$0x1]
    %41 = vrot.lane.b32.xlu0 %v40, 104
    %v42 = vpop.permute.xlu0 %41
    %vm43 = vcmask 31744
    %s44 = scalar_lea.vmem %s1, 6
    %45 = vst.msk [vmem:[%s44] sm:$0x1] %vm43, %v42
    %v46 = vld [vmem:[#allocation0] sm:$0x1]
    %47 = vrot.lane.b32.xlu0 %v46, 100
    %v48 = vpop.permute.xlu0 %47
    %vm49 = vcmask 31744
    %s50 = scalar_lea.vmem %s1, 7
    %51 = vst.msk [vmem:[%s50] sm:$0x1] %vm49, %v48
    %v52 = vld [vmem:[#allocation0] sm:$0x1]
    %53 = vrot.lane.b32.xlu0 %v52, 96
    %v54 = vpop.permute.xlu0 %53
    %vm55 = vcmask 31744
    %s56 = scalar_lea.vmem %s1, 8
    %57 = vst.msk [vmem:[%s56] sm:$0x1] %vm55, %v54
    %v58 = vld [vmem:[#allocation0] sm:$0x1]
    %59 = vrot.lane.b32.xlu0 %v58, 92
    %v60 = vpop.permute.xlu0 %59
    %vm61 = vcmask 31744
    %s62 = scalar_lea.vmem %s1, 9
    %63 = vst.msk [vmem:[%s62] sm:$0x1] %vm61, %v60
    %v64 = vld [vmem:[#allocation0] sm:$0x1]
    %65 = vrot.lane.b32.xlu0 %v64, 88
    %v66 = vpop.permute.xlu0 %65
    %vm67 = vcmask 31744
    %s68 = scalar_lea.vmem %s1, 10
    %69 = vst.msk [vmem:[%s68] sm:$0x1] %vm67, %v66
    %v70 = vld [vmem:[#allocation0] sm:$0x1]
    %71 = vrot.lane.b32.xlu0 %v70, 84
    %v72 = vpop.permute.xlu0 %71
    %vm73 = vcmask 31744
    %s74 = scalar_lea.vmem %s1, 11
    %75 = vst.msk [vmem:[%s74] sm:$0x1] %vm73, %v72
    %v76 = vld [vmem:[#allocation0] sm:$0x1]
    %77 = vrot.lane.b32.xlu0 %v76, 80
    %v78 = vpop.permute.xlu0 %77
    %vm79 = vcmask 31744
    %s80 = scalar_lea.vmem %s1, 12
    %81 = vst.msk [vmem:[%s80] sm:$0x1] %vm79, %v78
    %v82 = vld [vmem:[#allocation0] sm:$0x1]
    %83 = vrot.lane.b32.xlu0 %v82, 76
    %v84 = vpop.permute.xlu0 %83
    %vm85 = vcmask 31744
    %s86 = scalar_lea.vmem %s1, 13
    %87 = vst.msk [vmem:[%s86] sm:$0x1] %vm85, %v84
    %v88 = vld [vmem:[#allocation0] sm:$0x1]
    %89 = vrot.lane.b32.xlu0 %v88, 72
    %v90 = vpop.permute.xlu0 %89
    %vm91 = vcmask 31744
    %s92 = scalar_lea.vmem %s1, 14
    %93 = vst.msk [vmem:[%s92] sm:$0x1] %vm91, %v90
    %v94 = vld [vmem:[#allocation0] sm:$0x1]
    %95 = vrot.lane.b32.xlu0 %v94, 68
    %v96 = vpop.permute.xlu0 %95
    %vm97 = vcmask 31744
    %s98 = scalar_lea.vmem %s1, 15
    %99 = vst.msk [vmem:[%s98] sm:$0x1] %vm97, %v96

// kernel: input_fixer_forward.1
$region0: #{input_fixer_forward.1}
  #allocation0 [shape = 'u32[]', space=smem, size = 0x4, offset = 0x4, fixed_abs, tag = 'smem constant byte address 0x4 - core index']
  #allocation1 [shape = 'u32[144,128]{1,0:T(1,128)}', space=vmem, size = 0x12000, scoped, tag = 'internal scratch']
  %s0 = inlined_call_operand.vmem [shape: f32[4,128], index: 0, kind: input, shape index: {}]
  %s1 = inlined_call_operand.vmem [shape: f32[1,128], index: 1, kind: output, shape index: {}]
  %s2 = sld [smem:[#allocation0]]
  $region14: #{input_fixer_forward.1} parent=0
    _
  %s4 = ssub.s32 1, %s2
  %s5 = scalar_select 0, %s4, %s2
  // Predicated region
  $region2: #{input_fixer_forward.1} parent=0 // pred_check
    _
  $region3: #{input_fixer_forward.1} parent=0 // pred_check_branch
    %7 = sbr.rel (0) target = $region5
  $region4: #{input_fixer_forward.1} parent=0 // pred_region
    _
  $region5: #{input_fixer_forward.1} parent=0 // pred_fallthru
    _
  %v8 = vld [vmem:[%s0] sm:$0xf]
  %v9 = vxor.u32 %v8, 2147483648
  %v10 = vmul.f32 %v9, 1.442695
  %v11 = vpow.pop %v10
  %v12 = vadd.f32 %v11, 1.0
  %v13 = vrcp.pop %v12
  %v14 = vmul.f32 1.0, %v13
  %v15 = vsub.f32 0.0, %v8
  %v16 = vmul.f32 %v15, 1.442695
  %v17 = vpow.pop %v16
  %v19 = vrot.slane %v17, 7
  %v21 = vmul.f32 %v14, %v19
  %v23 = vrot.slane %v21, 2
  %v25 = vmul.f32 %v8, %v23
  %v26 = vsub.f32 1.0, %v21
  %v28 = vrot.slane %v26, 7
  %v30 = vmul.f32 %v8, %v28
  %v32 = vrot.slane %v30, 3
  %v34 = vadd.f32 %v25, %v32
  %35 = vst [vmem:[%s1] sm:$0x1] %v34
  // Predicated region
  $region6: #{input_fixer_forward.1} parent=0 // pred_check
    _
  $region7: #{input_fixer_forward.1} parent=0 // pred_check_branch
    %37 = sbr.rel (0) target = $region9
  $region8: #{input_fixer_forward.1} parent=0 // pred_region
    _
  $region9: #{input_fixer_forward.1} parent=0 // pred_fallthru
    _
  // Predicated region
  $region10: #{input_fixer_forward.1} parent=0 // pred_check
    _
  $region11: #{input_fixer_forward.1} parent=0 // pred_check_branch
    %39 = sbr.rel (0) target = $region13
  $region12: #{input_fixer_forward.1} parent=0 // pred_region
    _
  $region13: #{input_fixer_forward.1} parent=0 // pred_fallthru
    _

</llo_original>
